<compile_context>
chip_gen: v6e
topology: v6e:2x2x1
jax: 0.10.0
libtpu: 0.0.40
codegen_flags: <defaults>
</compile_context>

<pallas_src>
import math

import jax
import jax.numpy as jnp
from jax.experimental import pallas as pl
from jax.experimental.pallas import tpu as pltpu


def _build_pe_table(max_len: int, dim_embed: int, dtype=jnp.float32) -> jnp.ndarray:
    """Deterministic sinusoidal table, identical to the PyTorch __init__."""
    position = jnp.arange(max_len, dtype=jnp.float32)[:, None]            # (L, 1)
    div_term = jnp.exp(
        jnp.arange(0, dim_embed, 2, dtype=jnp.float32)
        * (-math.log(10000.0) / dim_embed)
    )                                                                      # (D/2,)
    args = position * div_term                                             # (L, D/2)
    pe = jnp.zeros((max_len, dim_embed), dtype=jnp.float32)
    pe = pe.at[:, 0::2].set(jnp.sin(args))
    pe = pe.at[:, 1::2].set(jnp.cos(args))
    return pe.astype(dtype)


def _add_pe_kernel(x_ref, pe_ref, o_ref):
    # x_ref/o_ref: (tb, ts, tc);  pe_ref: (ts, tc).
    # Broadcast over the leading batch-block dim: same vregs reused per row,
    # no cross-lane/sublane movement — pure VPU add on an HBM-bound kernel.
    o_ref[...] = x_ref[...] + pe_ref[...][None, :, :]


# Per-block byte budget for the x / out tiles (see header comment).
_VMEM_BLOCK_BUDGET = 2 * 1024 * 1024


def _round_down(x: int, m: int) -> int:
    return (x // m) * m


def _pick_fold(S: int, D: int) -> int:
    """Smallest divisor S2 of S such that S2*D is a multiple of 128.

    Falls back to S2 = S (full (1, S*D) flatten) when no divisor works; the
    full-extent / ragged-128 block rules below handle that case too.
    """
    for s2 in range(1, S + 1):
        if S % s2 == 0 and (s2 * D) % 128 == 0:
            return s2
    return S


def positional_encoding_forward(
    x: jnp.ndarray, pe: jnp.ndarray, *, block_budget_bytes: int | None = None
) -> jnp.ndarray:
    """x: (B, S, D); pe: (max_len, D). Returns x + pe[:S] broadcast over B."""
    B, S, D = x.shape
    max_len, d_pe = pe.shape
    if d_pe != D:
        raise ValueError(f"dim_embed mismatch: x has {D}, pe has {d_pe}")
    if S > max_len:
        raise ValueError(f"sequence length {S} exceeds max_len {max_len}")

    budget = _VMEM_BLOCK_BUDGET if block_budget_bytes is None else block_budget_bytes
    dtype = x.dtype
    itemsize = jnp.dtype(dtype).itemsize
    # Sublane alignment matching the dtype's packing: 8 (f32), 16 (bf16), 32 (int8/fp8).
    sub_align = max(8, 32 // itemsize)

    # Layout glue: cast pe to x.dtype (avoid in-kernel promotion) and fold the
    # sequence so the lane axis is a multiple of 128.
    S2 = _pick_fold(S, D)
    S1 = S // S2
    C = S2 * D
    x3 = x.reshape(B, S1, C)
    pe3 = pe[:S, :].astype(dtype).reshape(S1, C)

    budget_elems = max(1, budget // itemsize)

    # Lane tile: full extent if it fits (assuming >= sub_align rows), else the
    # largest multiple of 128 under budget (ragged last block handled by Pallas).
    lane_cap = max(128, _round_down(budget_elems // sub_align, 128))
    tc = C if C <= lane_cap else lane_cap

    # Sublane tile: full extent if it fits, else largest multiple of sub_align.
    row_cap = max(sub_align, budget_elems // tc)
    ts = S1 if S1 <= row_cap else max(sub_align, _round_down(row_cap, sub_align))

    # Batch tile: leading block dim (unconstrained), fills the rest of the budget.
    tb = min(B, max(1, budget_elems // (ts * tc)))

    # Batch innermost => pe tile re-fetched only when (row, column) tile changes.
    grid = (pl.cdiv(C, tc), pl.cdiv(S1, ts), pl.cdiv(B, tb))

    out3 = pl.pallas_call(
        _add_pe_kernel,
        out_shape=jax.ShapeDtypeStruct((B, S1, C), dtype),
        grid_spec=pl.GridSpec(
            grid=grid,
            in_specs=[
                pl.BlockSpec((tb, ts, tc), lambda j, s, b: (b, s, j)),
                pl.BlockSpec((ts, tc), lambda j, s, b: (s, j)),
            ],
            out_specs=pl.BlockSpec((tb, ts, tc), lambda j, s, b: (b, s, j)),
        ),
        compiler_params=pltpu.CompilerParams(
            dimension_semantics=("parallel", "parallel", "parallel"),
        ),
    )(x3, pe3)

    return out3.reshape(B, S, D)


if __name__ == "__main__":
    key = jax.random.PRNGKey(0)

    # --- Test 1: module-default-like small shape (max_len=64, dim_embed=32) ---
    MAX_LEN, DIM_EMBED = 64, 32
    B, S = 2, 8
    pe = _build_pe_table(MAX_LEN, DIM_EMBED)
    k1, k2 = jax.random.split(key)
    x = jax.random.normal(k1, (B, S, DIM_EMBED), dtype=jnp.float32)

    # TODO(synk): at these few-KiB sizes a standalone kernel is pure launch
    # overhead — in production fuse this add into the adjacent embedding /
    # projection kernel's epilogue instead.
    out = jax.block_until_ready(positional_encoding_forward(x, pe))
    ref = x + pe[:S, :][None, :, :]
    assert out.shape == (B, S, DIM_EMBED)
    assert jnp.allclose(out, ref, atol=1e-6, rtol=1e-6), "mismatch vs reference (test 1)"

    # --- Test 2: exercise multi-block grid + ragged last blocks (tiny budget) ---
    MAX_LEN2, DIM2 = 64, 48
    B2, S2_ = 3, 40
    pe2 = _build_pe_table(MAX_LEN2, DIM2)
    x2 = jax.random.normal(k2, (B2, S2_, DIM2), dtype=jnp.float32)
    out2 = jax.block_until_ready(
        positional_encoding_forward(x2, pe2, block_budget_bytes=8 * 1024)
    )
    ref2 = x2 + pe2[:S2_, :][None, :, :]
    assert out2.shape == (B2, S2_, DIM2)
    assert jnp.allclose(out2, ref2, atol=1e-6, rtol=1e-6), "mismatch vs reference (test 2)"

    print("KERNEL_OK")
</pallas_src>

<mosaic_0001>
module attributes {stable_mosaic.version = 11 : i64} {
  func.func @_add_pe_kernel(%arg0: i32, %arg1: i32, %arg2: i32, %arg3: memref<2x2x128xf32, #tpu.memory_space<vmem>>, %arg4: memref<2x128xf32, #tpu.memory_space<vmem>>, %arg5: memref<2x2x128xf32, #tpu.memory_space<vmem>>) attributes {dimension_semantics = [#tpu.dimension_semantics<parallel>, #tpu.dimension_semantics<parallel>, #tpu.dimension_semantics<parallel>], iteration_bounds = array<i64: 1, 1, 1>, scalar_prefetch = 0 : i64, scratch_operands = 0 : i64, tpu.core_type = #tpu.core_type<tc>, window_params = [{transform_indices = @transform_0, window_bounds = array<i64: 2, 2, 128>}, {transform_indices = @transform_1, window_bounds = array<i64: 2, 128>}, {transform_indices = @transform_2, window_bounds = array<i64: 2, 2, 128>}]} {
    %c0 = arith.constant 0 : index
    %c0_0 = arith.constant 0 : index
    %c0_1 = arith.constant 0 : index
    %0 = vector.load %arg3[%c0, %c0_0, %c0_1] : memref<2x2x128xf32, #tpu.memory_space<vmem>>, vector<2x2x128xf32>
    %c0_2 = arith.constant 0 : index
    %c0_3 = arith.constant 0 : index
    %1 = vector.load %arg4[%c0_2, %c0_3] : memref<2x128xf32, #tpu.memory_space<vmem>>, vector<2x128xf32>
    %2 = vector.shape_cast %1 : vector<2x128xf32> to vector<1x2x128xf32>
    %3 = vector.broadcast %2 : vector<1x2x128xf32> to vector<2x2x128xf32>
    %4 = arith.addf %0, %3 : vector<2x2x128xf32>
    %c0_4 = arith.constant 0 : index
    %c0_5 = arith.constant 0 : index
    %c0_6 = arith.constant 0 : index
    %5 = vector.load %arg5[%c0_4, %c0_5, %c0_6] : memref<2x2x128xf32, #tpu.memory_space<vmem>>, vector<2x2x128xf32>
    tpu.vector_store %arg5[%c0_4, %c0_5, %c0_6], %4 {strides = array<i32>} : memref<2x2x128xf32, #tpu.memory_space<vmem>>, vector<2x2x128xf32>,
    return
  }
  func.func @transform_0(%arg0: i32, %arg1: i32, %arg2: i32) -> (i32, i32, i32) {
    %c0_i32 = arith.constant 0 : i32
    return %arg2, %arg1, %arg0 : i32, i32, i32
  }
  func.func @transform_1(%arg0: i32, %arg1: i32, %arg2: i32) -> (i32, i32) {
    %c0_i32 = arith.constant 0 : i32
    return %arg1, %arg0 : i32, i32
  }
  func.func @transform_2(%arg0: i32, %arg1: i32, %arg2: i32) -> (i32, i32, i32) {
    %c0_i32 = arith.constant 0 : i32
    return %arg2, %arg1, %arg0 : i32, i32, i32
  }
}

</mosaic_0001>

<llo_original>
// kernel: tpu_custom_call.1
$region0: #{tpu_custom_call.1}
  #allocation0 [shape = 'u32[]', space=smem, size = 0x4, offset = 0x4, fixed_abs, tag = 'smem constant byte address 0x4 - core index']
  #allocation1 [shape = 'u32[144,128]{1,0:T(1,128)}', space=vmem, size = 0x12000, scoped, tag = 'internal scratch']
  %s0 = inlined_call_operand.hbm [shape: f32[2,2,128], index: 0, kind: input, shape index: {}]
  %s1 = inlined_call_operand.hbm [shape: f32[2,128], index: 1, kind: input, shape index: {}]
  %s2 = inlined_call_operand.hbm [shape: f32[2,2,128], index: 2, kind: output, shape index: {}]
  %s3 = sld [smem:[#allocation0]]
  $region26: #{tpu_custom_call.1} parent=0
    _
  %s5 = ssub.s32 1, %s3
  %s6 = scalar_select 0, %s5, %s3
  $region1: #{tpu_custom_call.1} parent=0
    #allocation2 [shape = 'u8[2048]{0}', space=vmem, size = 0x800, scoped, tag = 'input window, operand 0, single buffered']
    #allocation3 [shape = 's32[1]{0}', space=sflag, size = 0x4, scoped, tag = 'scoped memory for tpu_custom_call.1']
    #allocation4 [shape = 's32[1]{0}', space=sflag, size = 0x4, scoped, tag = 'scoped memory for tpu_custom_call.1']
    #allocation5 [shape = 'u8[1024]{0}', space=vmem, size = 0x400, scoped, tag = 'input window, operand 1, single buffered']
    #allocation6 [shape = 's32[1]{0}', space=sflag, size = 0x4, scoped, tag = 'scoped memory for tpu_custom_call.1']
    #allocation7 [shape = 'u8[2048]{0}', space=vmem, size = 0x800, scoped, tag = 'output window, operand 0, single buffered']
    %7 = vsyncpa [#allocation3], 0
    %8 = vsyncpa [#allocation6], 0
    %9 = vsyncpa [#allocation4], 0
    // Predicated region
    $region2: #{tpu_custom_call.1} parent=1 // pred_check
      _
    $region3: #{tpu_custom_call.1} parent=1 // pred_check_branch
      %11 = sbr.rel (0) target = $region5
    $region4: #{tpu_custom_call.1} parent=1 // pred_region
      %s13 = ssub.s32 64, 64
      %14 = vsyncadd [#allocation3], %s13
      %s15 = sshll.u32 [#allocation2], 4
      %s16 = int_to_ptr.vmem [resolvable:$true] %s15
      %21 = dma.hbm_to_vmem [thread:$0]  %s0, 64, %s16, [#allocation3], 32, 32, 2
    $region5: #{tpu_custom_call.1} parent=1 // pred_fallthru
      _
    // Predicated region
    $region6: #{tpu_custom_call.1} parent=1 // pred_check
      _
    $region7: #{tpu_custom_call.1} parent=1 // pred_check_branch
      %23 = sbr.rel (0) target = $region9
    $region8: #{tpu_custom_call.1} parent=1 // pred_region
      %s25 = ssub.s32 32, 32
      %26 = vsyncadd [#allocation6], %s25
      %s28 = sshll.u32 [#allocation5], 4
      %s29 = int_to_ptr.vmem [resolvable:$true] %s28
      %31 = dma.hbm_to_vmem [thread:$0]  %s1, 32, %s29, [#allocation6]
    $region9: #{tpu_custom_call.1} parent=1 // pred_fallthru
      _
    // Predicated region
    $region10: #{tpu_custom_call.1} parent=1 // pred_check
      _
    $region11: #{tpu_custom_call.1} parent=1 // pred_check_branch
      %33 = sbr.rel (0) target = $region13
    $region12: #{tpu_custom_call.1} parent=1 // pred_region
      %34 = dma.done [#allocation3], 64
    $region13: #{tpu_custom_call.1} parent=1 // pred_fallthru
      _
    // Predicated region
    $region14: #{tpu_custom_call.1} parent=1 // pred_check
      _
    $region15: #{tpu_custom_call.1} parent=1 // pred_check_branch
      %36 = sbr.rel (0) target = $region17
    $region16: #{tpu_custom_call.1} parent=1 // pred_region
      %37 = dma.done [#allocation6], 32
    $region17: #{tpu_custom_call.1} parent=1 // pred_fallthru
      _
    %v38 = vld [vmem:[#allocation2] sm:$0x3]
    %v39 = vld [vmem:[#allocation2 + $0x2] sm:$0x3]
    %v40 = vld [vmem:[#allocation5] sm:$0x3]
    %v41 = vadd.f32 %v38, %v40
    %v42 = vadd.f32 %v39, %v40
    %43 = vst [vmem:[#allocation7] sm:$0x3] %v41
    %44 = vst [vmem:[#allocation7 + $0x2] sm:$0x3] %v42
    // Predicated region
    $region18: #{tpu_custom_call.1} parent=1 // pred_check
      _
    $region19: #{tpu_custom_call.1} parent=1 // pred_check_branch
      %46 = sbr.rel (0) target = $region21
    $region20: #{tpu_custom_call.1} parent=1 // pred_region
      %s48 = ssub.s32 64, 64
      %49 = vsyncadd [#allocation4], %s48
      %s50 = sshll.u32 [#allocation7], 4
      %s51 = int_to_ptr.vmem [resolvable:$true] %s50
      %56 = dma.vmem_to_hbm [thread:$0]  %s51, 64, %s2, [#allocation4], 32, 32, 2
    $region21: #{tpu_custom_call.1} parent=1 // pred_fallthru
      _
    // Predicated region
    $region22: #{tpu_custom_call.1} parent=1 // pred_check
      _
    $region23: #{tpu_custom_call.1} parent=1 // pred_check_branch
      %58 = sbr.rel (0) target = $region25
    $region24: #{tpu_custom_call.1} parent=1 // pred_region
      %59 = dma.done [#allocation4], 64
    $region25: #{tpu_custom_call.1} parent=1 // pred_fallthru
      _
    %60 = vsyncpa [#allocation3], 1
    %61 = vsyncpa [#allocation6], 1
    %62 = vsyncpa [#allocation4], 1

</llo_original>
